<compile_context>
chip_gen: v7x
topology: tpu7x:2x2x1
jax: 0.10.0
libtpu: 0.0.40
codegen_flags: <defaults>
</compile_context>

<pallas_src>
import functools

import jax
import jax.numpy as jnp
from jax.experimental import pallas as pl
from jax.experimental.pallas import tpu as pltpu


def _round_up(x, m):
    return ((x + m - 1) // m) * m


# --------------------------------------------------------------------------
# Pass 1: fused MLP (Linear1 -> ReLU -> Linear2) + masked BN statistics
# --------------------------------------------------------------------------
def fused_mlp_stats_kernel(x_ref, w1_ref, b1_ref, w2_ref, b2_ref,
                           z_ref, sum_ref, sumsq_ref, *, n_valid, tile_n):
    i = pl.program_id(0)

    # Statistics accumulators are resident across the batch grid axis.
    @pl.when(i == 0)
    def _():
        sum_ref[...] = jnp.zeros_like(sum_ref)
        sumsq_ref[...] = jnp.zeros_like(sumsq_ref)

    # Linear1 + ReLU (bias broadcast hoisted once per tile; f32 MXU acc).
    x = x_ref[...]
    h = jnp.dot(x, w1_ref[...], preferred_element_type=jnp.float32) + b1_ref[...]
    h = jnp.maximum(h, 0.0)

    # Linear2
    z = jnp.dot(h, w2_ref[...], preferred_element_type=jnp.float32) + b2_ref[...]
    z_ref[...] = z.astype(z_ref.dtype)

    # Masked per-feature sum / sum-of-squares (exclude zero-padded batch rows).
    row = i * tile_n + jax.lax.broadcasted_iota(jnp.int32, (tile_n, 1), 0)
    mask = row < n_valid
    zm = jnp.where(mask, z, 0.0)
    sum_ref[...] += jnp.sum(zm, axis=0, keepdims=True)
    sumsq_ref[...] += jnp.sum(zm * zm, axis=0, keepdims=True)


# --------------------------------------------------------------------------
# Pass 2: BatchNorm normalize (training-mode batch stats, biased variance)
# --------------------------------------------------------------------------
def bn_normalize_kernel(z_ref, sum_ref, sumsq_ref, gamma_ref, beta_ref, o_ref,
                        *, n_valid, eps):
    inv_n = 1.0 / float(n_valid)
    mean = sum_ref[...] * inv_n
    var = jnp.maximum(sumsq_ref[...] * inv_n - mean * mean, 0.0)
    inv_std = jax.lax.rsqrt(var + eps)              # EUP slot
    scale = gamma_ref[...] * inv_std                # (1, H_pad)
    shift = beta_ref[...] - mean * scale            # (1, H_pad)
    o_ref[...] = (z_ref[...] * scale + shift).astype(o_ref.dtype)


# --------------------------------------------------------------------------
# Wrapper
# --------------------------------------------------------------------------
def encoder_forward(x, w1, b1, w2, b2, gamma, beta, *, block_n=128, eps=1e-5):
    N, D = x.shape
    H = w2.shape[1]

    # Lane / sublane friendly padded sizes.
    D_pad = _round_up(D, 128)
    H_pad = _round_up(H, 128)
    tile_n = min(block_n, _round_up(N, 8))
    N_pad = _round_up(N, tile_n)
    num_tiles = N_pad // tile_n

    f32 = jnp.float32
    xp = jnp.zeros((N_pad, D_pad), f32).at[:N, :D].set(x.astype(f32))
    w1p = jnp.zeros((D_pad, D_pad), f32).at[:D, :D].set(w1.astype(f32))
    b1p = jnp.zeros((1, D_pad), f32).at[:, :D].set(b1.astype(f32).reshape(1, D))
    w2p = jnp.zeros((D_pad, H_pad), f32).at[:D, :H].set(w2.astype(f32))
    b2p = jnp.zeros((1, H_pad), f32).at[:, :H].set(b2.astype(f32).reshape(1, H))
    gp = jnp.zeros((1, H_pad), f32).at[:, :H].set(gamma.astype(f32).reshape(1, H))
    bp = jnp.zeros((1, H_pad), f32).at[:, :H].set(beta.astype(f32).reshape(1, H))

    vmem_limit = 64 * 1024 * 1024  # legal on v5e/v6e/v7x

    # ---- Pass 1: z tiles + BN statistics (accumulator => "arbitrary") ----
    z, zsum, zsq = pl.pallas_call(
        functools.partial(fused_mlp_stats_kernel, n_valid=N, tile_n=tile_n),
        grid=(num_tiles,),
        in_specs=[
            pl.BlockSpec((tile_n, D_pad), lambda i: (i, 0)),   # x tile
            pl.BlockSpec((D_pad, D_pad), lambda i: (0, 0)),    # W1 resident
            pl.BlockSpec((1, D_pad), lambda i: (0, 0)),        # b1
            pl.BlockSpec((D_pad, H_pad), lambda i: (0, 0)),    # W2 resident
            pl.BlockSpec((1, H_pad), lambda i: (0, 0)),        # b2
        ],
        out_specs=[
            pl.BlockSpec((tile_n, H_pad), lambda i: (i, 0)),   # z tiles
            pl.BlockSpec((1, H_pad), lambda i: (0, 0)),        # sum accumulator
            pl.BlockSpec((1, H_pad), lambda i: (0, 0)),        # sumsq accumulator
        ],
        out_shape=[
            jax.ShapeDtypeStruct((N_pad, H_pad), f32),
            jax.ShapeDtypeStruct((1, H_pad), f32),
            jax.ShapeDtypeStruct((1, H_pad), f32),
        ],
        compiler_params=pltpu.CompilerParams(
            dimension_semantics=("arbitrary",),
            vmem_limit_bytes=vmem_limit,
        ),
    )(xp, w1p, b1p, w2p, b2p)

    # ---- Pass 2: normalize ("parallel" => megacore sharding on v7x) ----
    out = pl.pallas_call(
        functools.partial(bn_normalize_kernel, n_valid=N, eps=eps),
        grid=(num_tiles,),
        in_specs=[
            pl.BlockSpec((tile_n, H_pad), lambda i: (i, 0)),   # z tile
            pl.BlockSpec((1, H_pad), lambda i: (0, 0)),        # sum
            pl.BlockSpec((1, H_pad), lambda i: (0, 0)),        # sumsq
            pl.BlockSpec((1, H_pad), lambda i: (0, 0)),        # gamma
            pl.BlockSpec((1, H_pad), lambda i: (0, 0)),        # beta
        ],
        out_specs=pl.BlockSpec((tile_n, H_pad), lambda i: (i, 0)),
        out_shape=jax.ShapeDtypeStruct((N_pad, H_pad), f32),
        compiler_params=pltpu.CompilerParams(
            dimension_semantics=("parallel",),
            vmem_limit_bytes=vmem_limit,
        ),
    )(z, zsum, zsq, gp, bp)

    return out[:N, :H]


# --------------------------------------------------------------------------
# Params / reference / test
# --------------------------------------------------------------------------
def make_params(key, input_dim, hidden_dim):
    k1, k2, k3, k4 = jax.random.split(key, 4)
    bound1 = 1.0 / (input_dim ** 0.5)
    w1 = jax.random.uniform(k1, (input_dim, input_dim), jnp.float32, -bound1, bound1)
    b1 = jax.random.uniform(k2, (1, input_dim), jnp.float32, -bound1, bound1)
    bound2 = 1.0 / (input_dim ** 0.5)
    w2 = jax.random.uniform(k3, (input_dim, hidden_dim), jnp.float32, -bound2, bound2)
    b2 = jax.random.uniform(k4, (1, hidden_dim), jnp.float32, -bound2, bound2)
    gamma = jnp.ones((1, hidden_dim), jnp.float32)   # BN weight init
    beta = jnp.zeros((1, hidden_dim), jnp.float32)   # BN bias init
    return w1, b1, w2, b2, gamma, beta


def encoder_reference(x, w1, b1, w2, b2, gamma, beta):
    h = jnp.maximum(x @ w1 + b1, 0.0)
    z = h @ w2 + b2
    mean = jnp.mean(z, axis=0, keepdims=True)
    var = jnp.mean((z - mean) ** 2, axis=0, keepdims=True)
    return gamma * (z - mean) / jnp.sqrt(var + 1e-5) + beta


if __name__ == "__main__":
    batch, input_dim, hidden_dim = 8, 32, 16
    key = jax.random.PRNGKey(0)
    kx, kp = jax.random.split(key)
    x = jax.random.normal(kx, (batch, input_dim), jnp.float32)
    params = make_params(kp, input_dim, hidden_dim)

    out = encoder_forward(x, *params)
    out = jax.block_until_ready(out)

    ref = encoder_reference(x, *params)
    assert out.shape == (batch, hidden_dim)
    assert jnp.allclose(out, ref, atol=1e-4, rtol=1e-4), "mismatch vs reference"
    print("KERNEL_OK")
</pallas_src>

<mosaic_0001>
module attributes {stable_mosaic.version = 11 : i64} {
  func.func @fused_mlp_stats_kernel(%arg0: i32, %arg1: memref<8x128xf32, #tpu.memory_space<vmem>>, %arg2: memref<128x128xf32, #tpu.memory_space<vmem>>, %arg3: memref<1x128xf32, #tpu.memory_space<vmem>>, %arg4: memref<128x128xf32, #tpu.memory_space<vmem>>, %arg5: memref<1x128xf32, #tpu.memory_space<vmem>>, %arg6: memref<8x128xf32, #tpu.memory_space<vmem>>, %arg7: memref<1x128xf32, #tpu.memory_space<vmem>>, %arg8: memref<1x128xf32, #tpu.memory_space<vmem>>) attributes {dimension_semantics = [#tpu.dimension_semantics<arbitrary>], iteration_bounds = array<i64: 1>, scalar_prefetch = 0 : i64, scratch_operands = 0 : i64, tpu.core_type = #tpu.core_type<tc>, window_params = [{transform_indices = @transform_0, window_bounds = array<i64: 8, 128>}, {pipeline_mode = #tpu.pipeline_mode<synchronous>, transform_indices = @transform_1, window_bounds = array<i64: 128, 128>}, {pipeline_mode = #tpu.pipeline_mode<synchronous>, transform_indices = @transform_2, window_bounds = array<i64: 1, 128>}, {pipeline_mode = #tpu.pipeline_mode<synchronous>, transform_indices = @transform_3, window_bounds = array<i64: 128, 128>}, {pipeline_mode = #tpu.pipeline_mode<synchronous>, transform_indices = @transform_4, window_bounds = array<i64: 1, 128>}, {transform_indices = @transform_5, window_bounds = array<i64: 8, 128>}, {pipeline_mode = #tpu.pipeline_mode<synchronous>, transform_indices = @transform_6, window_bounds = array<i64: 1, 128>}, {pipeline_mode = #tpu.pipeline_mode<synchronous>, transform_indices = @transform_7, window_bounds = array<i64: 1, 128>}]} {
    %c0_i32 = arith.constant 0 : i32
    %0 = arith.cmpi eq, %arg0, %c0_i32 : i32
    %1 = arith.extui %0 : i1 to i32
    %c0_i32_0 = arith.constant 0 : i32
    %2 = arith.cmpi ne, %1, %c0_i32_0 : i32
    scf.if %2 {
      %cst_26 = arith.constant 0.000000e+00 : f32
      %38 = vector.broadcast %cst_26 : f32 to vector<1x128xf32>
      %c0_27 = arith.constant 0 : index
      %c0_28 = arith.constant 0 : index
      %39 = vector.load %arg7[%c0_27, %c0_28] : memref<1x128xf32, #tpu.memory_space<vmem>>, vector<1x128xf32>
      tpu.vector_store %arg7[%c0_27, %c0_28], %38 {strides = array<i32>} : memref<1x128xf32, #tpu.memory_space<vmem>>, vector<1x128xf32>,
      %cst_29 = arith.constant 0.000000e+00 : f32
      %40 = vector.broadcast %cst_29 : f32 to vector<1x128xf32>
      %c0_30 = arith.constant 0 : index
      %c0_31 = arith.constant 0 : index
      %41 = vector.load %arg8[%c0_30, %c0_31] : memref<1x128xf32, #tpu.memory_space<vmem>>, vector<1x128xf32>
      tpu.vector_store %arg8[%c0_30, %c0_31], %40 {strides = array<i32>} : memref<1x128xf32, #tpu.memory_space<vmem>>, vector<1x128xf32>,
    } else {
    }
    %c0 = arith.constant 0 : index
    %c0_1 = arith.constant 0 : index
    %3 = vector.load %arg1[%c0, %c0_1] : memref<8x128xf32, #tpu.memory_space<vmem>>, vector<8x128xf32>
    %c0_2 = arith.constant 0 : index
    %c0_3 = arith.constant 0 : index
    %4 = vector.load %arg2[%c0_2, %c0_3] : memref<128x128xf32, #tpu.memory_space<vmem>>, vector<128x128xf32>
    %cst = arith.constant dense<0.000000e+00> : vector<8x128xf32>
    %5 = tpu.matmul %3, %4, %cst {dimension_numbers = #tpu.dot_dimension_numbers<[1], [0], [0], [1], [0, 0, 1, 1], [], []>} : vector<8x128xf32>, vector<128x128xf32>, vector<8x128xf32> -> vector<8x128xf32>
    %c0_4 = arith.constant 0 : index
    %c0_5 = arith.constant 0 : index
    %6 = vector.load %arg3[%c0_4, %c0_5] : memref<1x128xf32, #tpu.memory_space<vmem>>, vector<1x128xf32>
    %7 = vector.broadcast %6 : vector<1x128xf32> to vector<8x128xf32>
    %8 = arith.addf %5, %7 : vector<8x128xf32>
    %cst_6 = arith.constant 0.000000e+00 : f32
    %9 = vector.broadcast %cst_6 : f32 to vector<8x128xf32>
    %10 = arith.maximumf %8, %9 : vector<8x128xf32>
    %c0_7 = arith.constant 0 : index
    %c0_8 = arith.constant 0 : index
    %11 = vector.load %arg4[%c0_7, %c0_8] : memref<128x128xf32, #tpu.memory_space<vmem>>, vector<128x128xf32>
    %cst_9 = arith.constant dense<0.000000e+00> : vector<8x128xf32>
    %12 = tpu.matmul %10, %11, %cst_9 {dimension_numbers = #tpu.dot_dimension_numbers<[1], [0], [0], [1], [0, 0, 1, 1], [], []>} : vector<8x128xf32>, vector<128x128xf32>, vector<8x128xf32> -> vector<8x128xf32>
    %c0_10 = arith.constant 0 : index
    %c0_11 = arith.constant 0 : index
    %13 = vector.load %arg5[%c0_10, %c0_11] : memref<1x128xf32, #tpu.memory_space<vmem>>, vector<1x128xf32>
    %14 = vector.broadcast %13 : vector<1x128xf32> to vector<8x128xf32>
    %15 = arith.addf %12, %14 : vector<8x128xf32>
    %c0_12 = arith.constant 0 : index
    %c0_13 = arith.constant 0 : index
    %16 = vector.load %arg6[%c0_12, %c0_13] : memref<8x128xf32, #tpu.memory_space<vmem>>, vector<8x128xf32>
    tpu.vector_store %arg6[%c0_12, %c0_13], %15 {strides = array<i32>} : memref<8x128xf32, #tpu.memory_space<vmem>>, vector<8x128xf32>,
    %c8_i32 = arith.constant 8 : i32
    %17 = arith.muli %arg0, %c8_i32 : i32
    %18 = tpu.iota {dimensions = array<i32: 0>} : vector<8x1xi32>
    %19 = vector.broadcast %17 : i32 to vector<8x1xi32>
    %20 = arith.addi %19, %18 : vector<8x1xi32>
    %c8_i32_14 = arith.constant 8 : i32
    %21 = vector.broadcast %c8_i32_14 : i32 to vector<8x1xi32>
    %22 = arith.cmpi slt, %20, %21 : vector<8x1xi32>
    %cst_15 = arith.constant 0.000000e+00 : f32
    %23 = vector.shape_cast %22 : vector<8x1xi1> to vector<8x1xi1>
    %24 = vector.broadcast %23 : vector<8x1xi1> to vector<8x128xi1>
    %25 = vector.broadcast %cst_15 : f32 to vector<8x128xf32>
    %26 = arith.select %24, %15, %25 : vector<8x128xi1>, vector<8x128xf32>
    %c0_16 = arith.constant 0 : index
    %c0_17 = arith.constant 0 : index
    %27 = vector.load %arg7[%c0_16, %c0_17] : memref<1x128xf32, #tpu.memory_space<vmem>>, vector<1x128xf32>
    %cst_18 = arith.constant dense<0.000000e+00> : vector<128xf32>
    %28 = vector.multi_reduction <add>, %26, %cst_18 [0] : vector<8x128xf32> to vector<128xf32>
    %29 = vector.shape_cast %28 : vector<128xf32> to vector<1x128xf32>
    %30 = arith.addf %27, %29 : vector<1x128xf32>
    %c0_19 = arith.constant 0 : index
    %c0_20 = arith.constant 0 : index
    %31 = vector.load %arg7[%c0_19, %c0_20] : memref<1x128xf32, #tpu.memory_space<vmem>>, vector<1x128xf32>
    tpu.vector_store %arg7[%c0_19, %c0_20], %30 {strides = array<i32>} : memref<1x128xf32, #tpu.memory_space<vmem>>, vector<1x128xf32>,
    %c0_21 = arith.constant 0 : index
    %c0_22 = arith.constant 0 : index
    %32 = vector.load %arg8[%c0_21, %c0_22] : memref<1x128xf32, #tpu.memory_space<vmem>>, vector<1x128xf32>
    %33 = arith.mulf %26, %26 : vector<8x128xf32>
    %cst_23 = arith.constant dense<0.000000e+00> : vector<128xf32>
    %34 = vector.multi_reduction <add>, %33, %cst_23 [0] : vector<8x128xf32> to vector<128xf32>
    %35 = vector.shape_cast %34 : vector<128xf32> to vector<1x128xf32>
    %36 = arith.addf %32, %35 : vector<1x128xf32>
    %c0_24 = arith.constant 0 : index
    %c0_25 = arith.constant 0 : index
    %37 = vector.load %arg8[%c0_24, %c0_25] : memref<1x128xf32, #tpu.memory_space<vmem>>, vector<1x128xf32>
    tpu.vector_store %arg8[%c0_24, %c0_25], %36 {strides = array<i32>} : memref<1x128xf32, #tpu.memory_space<vmem>>, vector<1x128xf32>,
    return
  }
  func.func @transform_0(%arg0: i32) -> (i32, i32) {
    %c0_i32 = arith.constant 0 : i32
    %c0_i32_0 = arith.constant 0 : i32
    return %arg0, %c0_i32 : i32, i32
  }
  func.func @transform_1(%arg0: i32) -> (i32, i32) {
    %c0_i32 = arith.constant 0 : i32
    %c0_i32_0 = arith.constant 0 : i32
    %c0_i32_1 = arith.constant 0 : i32
    return %c0_i32, %c0_i32_0 : i32, i32
  }
  func.func @transform_2(%arg0: i32) -> (i32, i32) {
    %c0_i32 = arith.constant 0 : i32
    %c0_i32_0 = arith.constant 0 : i32
    %c0_i32_1 = arith.constant 0 : i32
    return %c0_i32, %c0_i32_0 : i32, i32
  }
  func.func @transform_3(%arg0: i32) -> (i32, i32) {
    %c0_i32 = arith.constant 0 : i32
    %c0_i32_0 = arith.constant 0 : i32
    %c0_i32_1 = arith.constant 0 : i32
    return %c0_i32, %c0_i32_0 : i32, i32
  }
  func.func @transform_4(%arg0: i32) -> (i32, i32) {
    %c0_i32 = arith.constant 0 : i32
    %c0_i32_0 = arith.constant 0 : i32
    %c0_i32_1 = arith.constant 0 : i32
    return %c0_i32, %c0_i32_0 : i32, i32
  }
  func.func @transform_5(%arg0: i32) -> (i32, i32) {
    %c0_i32 = arith.constant 0 : i32
    %c0_i32_0 = arith.constant 0 : i32
    return %arg0, %c0_i32 : i32, i32
  }
  func.func @transform_6(%arg0: i32) -> (i32, i32) {
    %c0_i32 = arith.constant 0 : i32
    %c0_i32_0 = arith.constant 0 : i32
    %c0_i32_1 = arith.constant 0 : i32
    return %c0_i32, %c0_i32_0 : i32, i32
  }
  func.func @transform_7(%arg0: i32) -> (i32, i32) {
    %c0_i32 = arith.constant 0 : i32
    %c0_i32_0 = arith.constant 0 : i32
    %c0_i32_1 = arith.constant 0 : i32
    return %c0_i32, %c0_i32_0 : i32, i32
  }
}

</mosaic_0001>

<llo_original>
// kernel: tpu_custom_call.1
$region0: #{tpu_custom_call.1}
  #allocation0 [shape = 'u32[]', space=smem, size = 0x4, offset = 0x4, fixed_abs, tag = 'smem constant byte address 0x4 - core index']
  #allocation1 [shape = 'u32[144,128]{1,0:T(1,128)}', space=vmem, size = 0x12000, scoped, tag = 'internal scratch']
  %s0 = inlined_call_operand.hbm [shape: f32[8,128], index: 0, kind: input, shape index: {}]
  %s1 = inlined_call_operand.hbm [shape: f32[128,128], index: 1, kind: input, shape index: {}]
  %s2 = inlined_call_operand.hbm [shape: f32[1,128], index: 2, kind: input, shape index: {}]
  %s3 = inlined_call_operand.hbm [shape: f32[128,128], index: 3, kind: input, shape index: {}]
  %s4 = inlined_call_operand.hbm [shape: f32[1,128], index: 4, kind: input, shape index: {}]
  %s5 = inlined_call_operand.hbm [shape: f32[8,128], index: 5, kind: output, shape index: {0}]
  %s6 = inlined_call_operand.hbm [shape: f32[1,128], index: 6, kind: output, shape index: {1}]
  %s7 = inlined_call_operand.hbm [shape: f32[1,128], index: 7, kind: output, shape index: {2}]
  %8 = xla_tuple %s5, %s6, %s7
  %s9 = sld [smem:[#allocation0]]
  $region70: #{tpu_custom_call.1} parent=0
    _
  %s11 = ssub.s32 1, %s9
  %s12 = scalar_select 0, %s11, %s9
  $region1: #{tpu_custom_call.1} parent=0
    #allocation2 [shape = 'u8[4096]{0}', space=vmem, size = 0x1000, scoped, tag = 'input window, operand 0, single buffered']
    #allocation3 [shape = 's32[1]{0}', space=sflag, size = 0x4, scoped, tag = 'scoped memory for tpu_custom_call.1']
    #allocation4 [shape = 's32[1]{0}', space=sflag, size = 0x4, scoped, tag = 'scoped memory for tpu_custom_call.1']
    #allocation5 [shape = 'u8[65536]{0}', space=vmem, size = 0x10000, scoped, tag = 'input window, operand 1, single buffered']
    #allocation6 [shape = 's32[1]{0}', space=sflag, size = 0x4, scoped, tag = 'scoped memory for tpu_custom_call.1']
    #allocation7 [shape = 'u8[512]{0}', space=vmem, size = 0x400, scoped, tag = 'input window, operand 2, single buffered']
    #allocation8 [shape = 'u8[65536]{0}', space=vmem, size = 0x10000, scoped, tag = 'input window, operand 3, single buffered']
    #allocation9 [shape = 's32[1]{0}', space=sflag, size = 0x4, scoped, tag = 'scoped memory for tpu_custom_call.1']
    #allocation10 [shape = 'u8[512]{0}', space=vmem, size = 0x400, scoped, tag = 'input window, operand 4, single buffered']
    #allocation11 [shape = 'u8[4096]{0}', space=vmem, size = 0x1000, scoped, tag = 'output window, operand 0, single buffered']
    #allocation12 [shape = 'u8[512]{0}', space=vmem, size = 0x400, scoped, tag = 'output window, operand 1, single buffered']
    #allocation13 [shape = 's32[1]{0}', space=sflag, size = 0x4, scoped, tag = 'scoped memory for tpu_custom_call.1']
    #allocation14 [shape = 'u8[512]{0}', space=vmem, size = 0x400, scoped, tag = 'output window, operand 2, single buffered']
    %13 = vsyncpa [#allocation3], 0
    %14 = vsyncpa [#allocation6], 0
    %15 = vsyncpa [#allocation9], 0
    %16 = vsyncpa [#allocation4], 0
    %17 = vsyncpa [#allocation13], 0
    // Predicated region
    $region2: #{tpu_custom_call.1} parent=1 // pred_check
      _
    $region3: #{tpu_custom_call.1} parent=1 // pred_check_branch
      %19 = sbr.rel (0) target = $region5
    $region4: #{tpu_custom_call.1} parent=1 // pred_region
      %s21 = ssub.s32 128, 128
      %22 = vsyncadd [#allocation3], %s21
      %s24 = sshll.u32 [#allocation2], 4
      %s25 = int_to_ptr.vmem [resolvable:$true] %s24
      %27 = dma.hbm_to_vmem [thread:$0]  %s0, 128, %s25, [#allocation3]
    $region5: #{tpu_custom_call.1} parent=1 // pred_fallthru
      _
    // Predicated region
    $region6: #{tpu_custom_call.1} parent=1 // pred_check
      _
    $region7: #{tpu_custom_call.1} parent=1 // pred_check_branch
      %29 = sbr.rel (0) target = $region9
    $region8: #{tpu_custom_call.1} parent=1 // pred_region
      %s31 = ssub.s32 2048, 2048
      %32 = vsyncadd [#allocation6], %s31
      %s33 = sshll.u32 [#allocation5], 4
      %s34 = int_to_ptr.vmem [resolvable:$true] %s33
      %39 = dma.hbm_to_vmem [thread:$0]  %s1, 2048, %s34, [#allocation6], 128, 128, 8
    $region9: #{tpu_custom_call.1} parent=1 // pred_fallthru
      _
    // Predicated region
    $region10: #{tpu_custom_call.1} parent=1 // pred_check
      _
    $region11: #{tpu_custom_call.1} parent=1 // pred_check_branch
      %41 = sbr.rel (0) target = $region13
    $region12: #{tpu_custom_call.1} parent=1 // pred_region
      %s43 = ssub.s32 16, 16
      %44 = vsyncadd [#allocation6], %s43
      %s46 = sshll.u32 [#allocation7], 4
      %s47 = int_to_ptr.vmem [resolvable:$true] %s46
      %49 = dma.hbm_to_vmem [thread:$0]  %s2, 16, %s47, [#allocation6]
    $region13: #{tpu_custom_call.1} parent=1 // pred_fallthru
      _
    // Predicated region
    $region14: #{tpu_custom_call.1} parent=1 // pred_check
      _
    $region15: #{tpu_custom_call.1} parent=1 // pred_check_branch
      %51 = sbr.rel (0) target = $region17
    $region16: #{tpu_custom_call.1} parent=1 // pred_region
      %s53 = ssub.s32 2048, 2048
      %54 = vsyncadd [#allocation9], %s53
      %s55 = sshll.u32 [#allocation8], 4
      %s56 = int_to_ptr.vmem [resolvable:$true] %s55
      %61 = dma.hbm_to_vmem [thread:$0]  %s3, 2048, %s56, [#allocation9], 128, 128, 8
    $region17: #{tpu_custom_call.1} parent=1 // pred_fallthru
      _
    // Predicated region
    $region18: #{tpu_custom_call.1} parent=1 // pred_check
      _
    $region19: #{tpu_custom_call.1} parent=1 // pred_check_branch
      %63 = sbr.rel (0) target = $region21
    $region20: #{tpu_custom_call.1} parent=1 // pred_region
      %s65 = ssub.s32 16, 16
      %66 = vsyncadd [#allocation9], %s65
      %s68 = sshll.u32 [#allocation10], 4
      %s69 = int_to_ptr.vmem [resolvable:$true] %s68
      %71 = dma.hbm_to_vmem [thread:$0]  %s4, 16, %s69, [#allocation9]
    $region21: #{tpu_custom_call.1} parent=1 // pred_fallthru
      _
    // Predicated region
    $region22: #{tpu_custom_call.1} parent=1 // pred_check
      _
    $region23: #{tpu_custom_call.1} parent=1 // pred_check_branch
      %73 = sbr.rel (0) target = $region25
    $region24: #{tpu_custom_call.1} parent=1 // pred_region
      %74 = dma.done [#allocation3], 128
    $region25: #{tpu_custom_call.1} parent=1 // pred_fallthru
      _
    // Predicated region
    $region26: #{tpu_custom_call.1} parent=1 // pred_check
      _
    $region27: #{tpu_custom_call.1} parent=1 // pred_check_branch
      %76 = sbr.rel (0) target = $region29
    $region28: #{tpu_custom_call.1} parent=1 // pred_region
      %77 = dma.done [#allocation6], 2048
    $region29: #{tpu_custom_call.1} parent=1 // pred_fallthru
      _
    // Predicated region
    $region30: #{tpu_custom_call.1} parent=1 // pred_check
      _
    $region31: #{tpu_custom_call.1} parent=1 // pred_check_branch
      %79 = sbr.rel (0) target = $region33
    $region32: #{tpu_custom_call.1} parent=1 // pred_region
      %80 = dma.done [#allocation6], 16
    $region33: #{tpu_custom_call.1} parent=1 // pred_fallthru
      _
    // Predicated region
    $region34: #{tpu_custom_call.1} parent=1 // pred_check
      _
    $region35: #{tpu_custom_call.1} parent=1 // pred_check_branch
      %82 = sbr.rel (0) target = $region37
    $region36: #{tpu_custom_call.1} parent=1 // pred_region
      %83 = dma.done [#allocation9], 2048
    $region37: #{tpu_custom_call.1} parent=1 // pred_fallthru
      _
    // Predicated region
    $region38: #{tpu_custom_call.1} parent=1 // pred_check
      _
    $region39: #{tpu_custom_call.1} parent=1 // pred_check_branch
      %85 = sbr.rel (0) target = $region41
    $region40: #{tpu_custom_call.1} parent=1 // pred_region
      %86 = dma.done [#allocation9], 16
    $region41: #{tpu_custom_call.1} parent=1 // pred_fallthru
      _
    %p87 = scmp.eq.s32.totalorder 0, 0
    // Predicated region
    $region42: #{tpu_custom_call.1} parent=1 // pred_check
      %p88 = pneg %p87
    $region43: #{tpu_custom_call.1} parent=1 // pred_check_branch
      %90 = sbr.rel (%p88) target = $region45
    $region44: #{tpu_custom_call.1} parent=1 // pred_region
      %91 = vst [vmem:[#allocation12] sm:$0x1] 0.0
      %92 = vst [vmem:[#allocation14] sm:$0x1] 0.0
    $region45: #{tpu_custom_call.1} parent=1 // pred_fallthru
      _
    %v93 = vld [vmem:[#allocation2] sm:$0xff]
    %v94 = vld [vmem:[#allocation5] sm:$0xff]
    %v95 = vld [vmem:[#allocation5 + $0x8] sm:$0xff]
    %v96 = vld [vmem:[#allocation5 + $0x10] sm:$0xff]
    %v97 = vld [vmem:[#allocation5 + $0x18] sm:$0xff]
    %v98 = vld [vmem:[#allocation5 + $0x20] sm:$0xff]
    %v99 = vld [vmem:[#allocation5 + $0x28] sm:$0xff]
    %v100 = vld [vmem:[#allocation5 + $0x30] sm:$0xff]
    %v101 = vld [vmem:[#allocation5 + $0x38] sm:$0xff]
    %v102 = vld [vmem:[#allocation5 + $0x40] sm:$0xff]
    %v103 = vld [vmem:[#allocation5 + $0x48] sm:$0xff]
    %v104 = vld [vmem:[#allocation5 + $0x50] sm:$0xff]
    %v105 = vld [vmem:[#allocation5 + $0x58] sm:$0xff]
    %v106 = vld [vmem:[#allocation5 + $0x60] sm:$0xff]
    %v107 = vld [vmem:[#allocation5 + $0x68] sm:$0xff]
    %v108 = vld [vmem:[#allocation5 + $0x70] sm:$0xff]
    %v109 = vld [vmem:[#allocation5 + $0x78] sm:$0xff]
    %v110 = vld [vmem:[#allocation7] sm:$0x1]
    %v112 = vlaneseq
    %v113 = vshrl.u32 %v112, 7
    %v114 = vsub.s32 0, %v113
    %v115 = vrot.slane %v110, %v114
    %117 = vmatprep.subr.mxu0 0.0
    %118 = vmatpush1.msra.mxu0 %v94
    %119 = vmatprep.subr.mxu0 0.0
    %120 = vmatpush1.msra.mxu0 %v95
    %121 = vmatprep.subr.mxu0 0.0
    %122 = vmatpush1.msra.mxu0 %v96
    %123 = vmatprep.subr.mxu0 0.0
    %124 = vmatpush1.msra.mxu0 %v97
    %125 = vmatprep.subr.mxu0 0.0
    %126 = vmatpush1.msra.mxu0 %v98
    %127 = vmatprep.subr.mxu0 0.0
    %128 = vmatpush1.msra.mxu0 %v99
    %129 = vmatprep.subr.mxu0 0.0
    %130 = vmatpush1.msra.mxu0 %v100
    %131 = vmatprep.subr.mxu0 0.0
    %132 = vmatpush1.msra.mxu0 %v101
    %133 = vmatprep.subr.mxu0 0.0
    %134 = vmatpush1.msra.mxu0 %v102
    %135 = vmatprep.subr.mxu0 0.0
    %136 = vmatpush1.msra.mxu0 %v103
    %137 = vmatprep.subr.mxu0 0.0
    %138 = vmatpush1.msra.mxu0 %v104
    %139 = vmatprep.subr.mxu0 0.0
    %140 = vmatpush1.msra.mxu0 %v105
    %141 = vmatprep.subr.mxu0 0.0
    %142 = vmatpush1.msra.mxu0 %v106
    %143 = vmatprep.subr.mxu0 0.0
    %144 = vmatpush1.msra.mxu0 %v107
    %145 = vmatprep.subr.mxu0 0.0
    %146 = vmatpush1.msra.mxu0 %v108
    %147 = vmatprep.subr.mxu0 0.0
    %148 = vmatpush1.msra.mxu0 %v109
    %149 = vmatprep.subr.mxu0 0.0
    %150 = vmatpush1.msra.mxu0 0.0
    %151 = vmatprep.subr.mxu0 0.0
    %152 = vmatpush1.msra.mxu0 0.0
    %153 = vmatprep.subr.mxu0 0.0
    %154 = vmatpush1.msra.mxu0 0.0
    %155 = vmatprep.subr.mxu0 0.0
    %156 = vmatpush1.msra.mxu0 0.0
    %157 = vmatprep.subr.mxu0 0.0
    %158 = vmatpush1.msra.mxu0 0.0
    %159 = vmatprep.subr.mxu0 0.0
    %160 = vmatpush1.msra.mxu0 0.0
    %161 = vmatprep.subr.mxu0 0.0
    %162 = vmatpush1.msra.mxu0 0.0
    %163 = vmatprep.subr.mxu0 0.0
    %164 = vmatpush1.msra.mxu0 0.0
    %165 = vmatprep.subr.mxu0 0.0
    %166 = vmatpush1.msra.mxu0 0.0
    %167 = vmatprep.subr.mxu0 0.0
    %168 = vmatpush1.msra.mxu0 0.0
    %169 = vmatprep.subr.mxu0 0.0
    %170 = vmatpush1.msra.mxu0 0.0
    %171 = vmatprep.subr.mxu0 0.0
    %172 = vmatpush1.msra.mxu0 0.0
    %173 = vmatprep.subr.mxu0 0.0
    %174 = vmatpush1.msra.mxu0 0.0
    %175 = vmatprep.subr.mxu0 0.0
    %176 = vmatpush1.msra.mxu0 0.0
    %177 = vmatprep.subr.mxu0 0.0
    %178 = vmatpush1.msra.mxu0 0.0
    %179 = vmatprep.subr.mxu0 0.0
    %180 = vmatpush1.msra.mxu0 0.0
    %181 = vmatprep.mubr.f32.mxu0 0.0
    %182 = vmatmul.mubr.f32.gmra.mrb[0].mxu0 %v93
    %v183 = vpop.f32.mrb[0].mxu0
    %v184 = vadd.f32 %v115, %v183
    %v185 = vpop.f32.mrb[0].mxu0
    %186 = vdwg.mxu0
    %v187 = vmax.f32 %v184, 0.0
    %v188 = vld [vmem:[#allocation8] sm:$0xff]
    %v189 = vld [vmem:[#allocation8 + $0x8] sm:$0xff]
    %v190 = vld [vmem:[#allocation8 + $0x10] sm:$0xff]
    %v191 = vld [vmem:[#allocation8 + $0x18] sm:$0xff]
    %v192 = vld [vmem:[#allocation8 + $0x20] sm:$0xff]
    %v193 = vld [vmem:[#allocation8 + $0x28] sm:$0xff]
    %v194 = vld [vmem:[#allocation8 + $0x30] sm:$0xff]
    %v195 = vld [vmem:[#allocation8 + $0x38] sm:$0xff]
    %v196 = vld [vmem:[#allocation8 + $0x40] sm:$0xff]
    %v197 = vld [vmem:[#allocation8 + $0x48] sm:$0xff]
    %v198 = vld [vmem:[#allocation8 + $0x50] sm:$0xff]
    %v199 = vld [vmem:[#allocation8 + $0x58] sm:$0xff]
    %v200 = vld [vmem:[#allocation8 + $0x60] sm:$0xff]
    %v201 = vld [vmem:[#allocation8 + $0x68] sm:$0xff]
    %v202 = vld [vmem:[#allocation8 + $0x70] sm:$0xff]
    %v203 = vld [vmem:[#allocation8 + $0x78] sm:$0xff]
    %v204 = vld [vmem:[#allocation10] sm:$0x1]
    %v206 = vlaneseq
    %v207 = vshrl.u32 %v206, 7
    %v208 = vsub.s32 0, %v207
    %v209 = vrot.slane %v204, %v208
    %211 = vmatprep.subr.mxu0 0.0
    %212 = vmatpush1.msra.mxu0 %v188
    %213 = vmatprep.subr.mxu0 0.0
    %214 = vmatpush1.msra.mxu0 %v189
    %215 = vmatprep.subr.mxu0 0.0
    %216 = vmatpush1.msra.mxu0 %v190
    %217 = vmatprep.subr.mxu0 0.0
    %218 = vmatpush1.msra.mxu0 %v191
    %219 = vmatprep.subr.mxu0 0.0
    %220 = vmatpush1.msra.mxu0 %v192
    %221 = vmatprep.subr.mxu0 0.0
    %222 = vmatpush1.msra.mxu0 %v193
    %223 = vmatprep.subr.mxu0 0.0
    %224 = vmatpush1.msra.mxu0 %v194
    %225 = vmatprep.subr.mxu0 0.0
    %226 = vmatpush1.msra.mxu0 %v195
    %227 = vmatprep.subr.mxu0 0.0
    %228 = vmatpush1.msra.mxu0 %v196
    %229 = vmatprep.subr.mxu0 0.0
    %230 = vmatpush1.msra.mxu0 %v197
    %231 = vmatprep.subr.mxu0 0.0
    %232 = vmatpush1.msra.mxu0 %v198
    %233 = vmatprep.subr.mxu0 0.0
    %234 = vmatpush1.msra.mxu0 %v199
    %235 = vmatprep.subr.mxu0 0.0
    %236 = vmatpush1.msra.mxu0 %v200
    %237 = vmatprep.subr.mxu0 0.0
    %238 = vmatpush1.msra.mxu0 %v201
    %239 = vmatprep.subr.mxu0 0.0
    %240 = vmatpush1.msra.mxu0 %v202
    %241 = vmatprep.subr.mxu0 0.0
    %242 = vmatpush1.msra.mxu0 %v203
    %243 = vmatprep.subr.mxu0 0.0
    %244 = vmatpush1.msra.mxu0 0.0
    %245 = vmatprep.subr.mxu0 0.0
    %246 = vmatpush1.msra.mxu0 0.0
    %247 = vmatprep.subr.mxu0 0.0
    %248 = vmatpush1.msra.mxu0 0.0
    %249 = vmatprep.subr.mxu0 0.0
    %250 = vmatpush1.msra.mxu0 0.0
    %251 = vmatprep.subr.mxu0 0.0
    %252 = vmatpush1.msra.mxu0 0.0
    %253 = vmatprep.subr.mxu0 0.0
    %254 = vmatpush1.msra.mxu0 0.0
    %255 = vmatprep.subr.mxu0 0.0
    %256 = vmatpush1.msra.mxu0 0.0
    %257 = vmatprep.subr.mxu0 0.0
    %258 = vmatpush1.msra.mxu0 0.0
    %259 = vmatprep.subr.mxu0 0.0
    %260 = vmatpush1.msra.mxu0 0.0
    %261 = vmatprep.subr.mxu0 0.0
    %262 = vmatpush1.msra.mxu0 0.0
    %263 = vmatprep.subr.mxu0 0.0
    %264 = vmatpush1.msra.mxu0 0.0
    %265 = vmatprep.subr.mxu0 0.0
    %266 = vmatpush1.msra.mxu0 0.0
    %267 = vmatprep.subr.mxu0 0.0
    %268 = vmatpush1.msra.mxu0 0.0
    %269 = vmatprep.subr.mxu0 0.0
    %270 = vmatpush1.msra.mxu0 0.0
    %271 = vmatprep.subr.mxu0 0.0
    %272 = vmatpush1.msra.mxu0 0.0
    %273 = vmatprep.subr.mxu0 0.0
    %274 = vmatpush1.msra.mxu0 0.0
    %275 = vmatprep.mubr.f32.mxu0 0.0
    %276 = vmatmul.mubr.f32.gmra.mrb[0].mxu0 %v187
    %v277 = vpop.f32.mrb[0].mxu0
    %v278 = vadd.f32 %v209, %v277
    %v279 = vpop.f32.mrb[0].mxu0
    %280 = vdwg.mxu0
    %281 = vst [vmem:[#allocation11] sm:$0xff] %v278
    %s282 = smul.u32 0, 8
    %v283 = vlaneseq
    %v284 = vshrl.u32 %v283, 7
    %v285 = vstv %s282
    %v286 = vadd.s32 %v285, %v284
    %vm287 = vcmp.lt.s32.totalorder %v286, 8
    %v288 = vsel %vm287, 1, 0
    %vm289 = vcmp.eq.s32.totalorder %v288, 1
    %v290 = vsel %vm289, %v278, 0.0
    %v291 = vld [vmem:[#allocation12] sm:$0x1]
    %v292 = vrot.slane %v290, 4
    %v293 = vadd.f32 %v290, %v292
    %v294 = vrot.slane %v293, 2
    %v295 = vadd.f32 %v293, %v294
    %v296 = vrot.slane %v295, 1
    %v297 = vadd.f32 %v295, %v296
    %v298 = vadd.f32 %v291, %v297
    %299 = vst [vmem:[#allocation12] sm:$0x1] %v298
    %v300 = vld [vmem:[#allocation14] sm:$0x1]
    %v301 = vmul.f32 %v290, %v290
    %v302 = vrot.slane %v301, 4
    %v303 = vadd.f32 %v301, %v302
    %v304 = vrot.slane %v303, 2
    %v305 = vadd.f32 %v303, %v304
    %v306 = vrot.slane %v305, 1
    %v307 = vadd.f32 %v305, %v306
    %v308 = vadd.f32 %v300, %v307
    %309 = vst [vmem:[#allocation14] sm:$0x1] %v308
    // Predicated region
    $region46: #{tpu_custom_call.1} parent=1 // pred_check
      _
    $region47: #{tpu_custom_call.1} parent=1 // pred_check_branch
      %311 = sbr.rel (0) target = $region49
    $region48: #{tpu_custom_call.1} parent=1 // pred_region
      %s313 = ssub.s32 128, 128
      %314 = vsyncadd [#allocation4], %s313
      %s316 = sshll.u32 [#allocation11], 4
      %s317 = int_to_ptr.vmem [resolvable:$true] %s316
      %319 = dma.vmem_to_hbm [thread:$0]  %s317, 128, %s5, [#allocation4]
    $region49: #{tpu_custom_call.1} parent=1 // pred_fallthru
      _
    // Predicated region
    $region50: #{tpu_custom_call.1} parent=1 // pred_check
      _
    $region51: #{tpu_custom_call.1} parent=1 // pred_check_branch
      %321 = sbr.rel (0) target = $region53
    $region52: #{tpu_custom_call.1} parent=1 // pred_region
      %s323 = ssub.s32 16, 16
      %324 = vsyncadd [#allocation13], %s323
      %s326 = sshll.u32 [#allocation12], 4
      %s327 = int_to_ptr.vmem [resolvable:$true] %s326
      %329 = dma.vmem_to_hbm [thread:$0]  %s327, 16, %s6, [#allocation13]
    $region53: #{tpu_custom_call.1} parent=1 // pred_fallthru
      _
    // Predicated region
    $region54: #{tpu_custom_call.1} parent=1 // pred_check
      _
    $region55: #{tpu_custom_call.1} parent=1 // pred_check_branch
      %331 = sbr.rel (0) target = $region57
    $region56: #{tpu_custom_call.1} parent=1 // pred_region
      %s333 = ssub.s32 16, 16
      %334 = vsyncadd [#allocation13], %s333
      %s336 = sshll.u32 [#allocation14], 4
      %s337 = int_to_ptr.vmem [resolvable:$true] %s336
      %339 = dma.vmem_to_hbm [thread:$0]  %s337, 16, %s7, [#allocation13]
    $region57: #{tpu_custom_call.1} parent=1 // pred_fallthru
      _
    // Predicated region
    $region58: #{tpu_custom_call.1} parent=1 // pred_check
      _
    $region59: #{tpu_custom_call.1} parent=1 // pred_check_branch
      %341 = sbr.rel (0) target = $region61
    $region60: #{tpu_custom_call.1} parent=1 // pred_region
      %342 = dma.done [#allocation4], 128
    $region61: #{tpu_custom_call.1} parent=1 // pred_fallthru
      _
    // Predicated region
    $region62: #{tpu_custom_call.1} parent=1 // pred_check
      _
    $region63: #{tpu_custom_call.1} parent=1 // pred_check_branch
      %344 = sbr.rel (0) target = $region65
    $region64: #{tpu_custom_call.1} parent=1 // pred_region
      %345 = dma.done [#allocation13], 16
    $region65: #{tpu_custom_call.1} parent=1 // pred_fallthru
      _
    // Predicated region
    $region66: #{tpu_custom_call.1} parent=1 // pred_check
      _
    $region67: #{tpu_custom_call.1} parent=1 // pred_check_branch
      %347 = sbr.rel (0) target = $region69
    $region68: #{tpu_custom_call.1} parent=1 // pred_region
      %348 = dma.done [#allocation13], 16
    $region69: #{tpu_custom_call.1} parent=1 // pred_fallthru
      _
    %349 = vsyncpa [#allocation3], 1
    %350 = vsyncpa [#allocation6], 1
    %351 = vsyncpa [#allocation9], 1
    %352 = vsyncpa [#allocation4], 1
    %353 = vsyncpa [#allocation13], 1

</llo_original>
